<compile_context>
chip_gen: v5e
topology: v5e:2x2
jax: 0.10.0
libtpu: 0.0.40
codegen_flags: <defaults>
</compile_context>

<pallas_src>
import math

import jax
import jax.numpy as jnp
from jax.experimental import pallas as pl
from jax.experimental.pallas import tpu as pltpu


def _make_pma_kernel(num_heads, dim, num_seeds, n_set, block_b, ln):
    HS = num_heads * num_seeds
    NSD = num_seeds * dim          # lane-dense output width (= 128 for PAB)
    TB = block_b

    def _fast_recip(x):
        # EUP approximate reciprocal (off the VPU) + one Newton step
        # (~1e-6 relative error).
        r = pl.reciprocal(x, approx=True)
        return r * (2.0 - x * r)

    def kernel(x_ref, q_ref, ws_ref, bs_ref, wvt_ref, bvt_ref, g_ref,
               wobd_ref, bob_ref, *rest):
        o_ref = rest[-1]
        sm_ref = rest[0] if ln else None

        # (TB, n_set, dim) -> (TB*n_set, dim); n_set == 8 so this is layout-free.
        x2 = x_ref[...].reshape(TB * n_set, dim)

        # ---- scores: ONE 2-D MXU matmul (Q and K projections pre-folded).
        s2 = (jnp.dot(x2, ws_ref[...], preferred_element_type=jnp.float32)
              + bs_ref[...])                                   # (TB*n_set, HS)
        s3 = s2.reshape(TB, n_set, HS)

        # ---- softmax over the set axis (full 8-sublane reduce).
        m = jnp.max(s3, axis=1, keepdims=True)
        e = jnp.exp(s3 - m)
        a3 = e * _fast_recip(jnp.sum(e, axis=1, keepdims=True))  # (TB,n_set,HS)

        # ---- scatter attention weights to the lane-dense (seed*dim) layout:
        # one (TB*n_set,HS)@(HS,NSD) 0/1 matmul replaces the batched A@V, the
        # head mask and the per-head fold loop.
        ag = jnp.dot(a3.reshape(TB * n_set, HS), g_ref[...],
                     preferred_element_type=jnp.float32)       # (TB*n_set,NSD)

        # ---- V projected straight into the seed-tiled lane-dense layout.
        v2 = (jnp.dot(x2, wvt_ref[...], preferred_element_type=jnp.float32)
              + bvt_ref[...])                                  # (TB*n_set,NSD)

        # ---- contraction over the set axis: lane-dense VPU multiply + one
        # aligned sublane reduce -> attention output is born (TB, NSD).
        o_attn = jnp.sum((ag * v2).reshape(TB, n_set, NSD), axis=1)

        # ---- residual with the hoisted, lane-dense Q row (1, NSD).
        o = q_ref[...] + o_attn

        def _seg_layernorm(y):
            # LayerNorm over each dim-lane group, kept in the 128-lane layout
            # via a (NSD, NSD) segment-mean matmul.  eps=1e-5, no affine.
            mu = jnp.dot(y, sm_ref[...], preferred_element_type=jnp.float32)
            yc = y - mu
            var = jnp.dot(yc * yc, sm_ref[...],
                          preferred_element_type=jnp.float32)
            return yc * jax.lax.rsqrt(var + 1e-5)

        if ln:
            o = _seg_layernorm(o)                              # ln0

        # ---- O = O + sigmoid(fc_o(O)): block-diagonal Wo -> one full
        # (TB,NSD)@(NSD,NSD) MXU matmul; epilogue never leaves the lane-dense
        # layout.
        proj = (jnp.dot(o, wobd_ref[...], preferred_element_type=jnp.float32)
                + bob_ref[...])
        o = o + _fast_recip(1.0 + jnp.exp(-proj))              # sigmoid
        if ln:
            o = _seg_layernorm(o)                              # ln1

        # ---- full, unmasked lane-dense store: (TB, NSD) = (TB, 128).
        o_ref[...] = o.astype(o_ref.dtype)

    return kernel


def _choose_block_b(B, max_block=256):
    """Batch rows per grid step.

    v5e/v6e have a single TensorCore, so prefer one fat step (per-step
    pipeline overhead ~0.35us dominates at these tiny shapes and VMEM is
    nowhere near a constraint: the X block at tb=256 is ~1 MiB incl. padding,
    x2 buffers).  For larger B, split into an even number of equal
    multiple-of-8 blocks so dimension_semantics=("parallel",) gives the two
    v7x TensorCores balanced halves.
    """
    if B <= max_block:
        return B
    steps = pl.cdiv(B, max_block)
    if steps % 2:
        steps += 1                       # even split -> balanced on 2 TCs
    tb = pl.cdiv(B, steps)
    return ((tb + 7) // 8) * 8


def pma_forward(X, S, params, num_heads, ln=False, block_b=None):
    """Pallas implementation of PMA.forward(X) (the MAB attention block).

    X : (B, n_set, dim) float32
    S : (num_seeds, dim) float32   (nn.Parameter(1, num_seeds, dim), squeezed)
    params : dict with wq, bq, wk, bk, wv, bv, wo, bo  (weights stored (in, out))
    """
    B, n_set, dim = X.shape
    num_seeds = S.shape[0]
    ds = dim // num_heads
    HS = num_heads * num_seeds
    NSD = num_seeds * dim
    scale = 1.0 / math.sqrt(dim)         # PyTorch scales by sqrt(dim_V)
    hi = jax.lax.Precision.HIGHEST       # tiny batch-invariant precomputes

    # ---- batch-invariant precompute (hoisted out of the grid) --------------
    # Q projection, emitted in the lane-dense (1, num_seeds*dim) layout.
    q = jnp.dot(S, params["wq"], precision=hi) + params["bq"]      # (S, dim)
    q128 = q.reshape(1, NSD)

    # Block-diagonal, pre-scaled Q (row h*S+s holds head h of seed s), folded
    # together with the K projection: scores = X2 @ w_s + b_s directly.
    eye_h = jnp.eye(num_heads, dtype=jnp.float32)
    qbd = (q.reshape(1, num_seeds, num_heads, ds) *
           eye_h[:, None, :, None]).reshape(HS, dim) * scale       # (HS, dim)
    w_s = jnp.dot(params["wk"], qbd.T, precision=hi)               # (dim, HS)
    b_s = jnp.dot(params["bk"], qbd.T, precision=hi)               # (1, HS)

    # V projection weights replicated per seed -> V lands lane-dense.
    w_vt = jnp.tile(params["wv"], (1, num_seeds))                  # (dim, NSD)
    b_vt = jnp.tile(params["bv"], (1, num_seeds))                  # (1, NSD)

    # 0/1 gather matrix: G[h*S + s, s*dim + d] = 1 iff d // ds == h.
    row_h = jnp.arange(HS) // num_seeds
    row_s = jnp.arange(HS) % num_seeds
    col_s = jnp.arange(NSD) // dim
    col_h = (jnp.arange(NSD) % dim) // ds
    g = ((row_h[:, None] == col_h[None, :]) &
         (row_s[:, None] == col_s[None, :])).astype(jnp.float32)   # (HS, NSD)

    # Block-diagonal fc_o and the LayerNorm segment-mean matrix.
    wo_bd = jnp.kron(jnp.eye(num_seeds, dtype=jnp.float32), params["wo"])
    bo_t = jnp.tile(params["bo"], (1, num_seeds))                  # (1, NSD)
    segmean = jnp.kron(jnp.eye(num_seeds, dtype=jnp.float32),
                       jnp.full((dim, dim), 1.0 / dim, jnp.float32))

    # ---- grid / padding -----------------------------------------------------
    tb = _choose_block_b(B) if block_b is None else block_b
    grid_b = pl.cdiv(B, tb)
    Bp = grid_b * tb
    Xp = X if Bp == B else jnp.pad(X, ((0, Bp - B), (0, 0), (0, 0)))

    kernel = _make_pma_kernel(num_heads, dim, num_seeds, n_set, tb, ln)

    def full(shape):
        return pl.BlockSpec(shape, lambda b, _s=shape: tuple(0 for _ in _s))

    inputs = [Xp, q128, w_s, b_s, w_vt, b_vt, g, wo_bd, bo_t]
    in_specs = ([pl.BlockSpec((tb, n_set, dim), lambda b: (b, 0, 0))] +
                [full(a.shape) for a in inputs[1:]])
    if ln:
        inputs.append(segmean)
        in_specs.append(full(segmean.shape))

    out = pl.pallas_call(
        kernel,
        out_shape=jax.ShapeDtypeStruct((Bp, NSD), X.dtype),
        grid_spec=pltpu.PrefetchScalarGridSpec(
            num_scalar_prefetch=0,
            grid=(grid_b,),
            in_specs=in_specs,
            out_specs=pl.BlockSpec((tb, NSD), lambda b: (b, 0)),
        ),
        compiler_params=pltpu.CompilerParams(
            dimension_semantics=("parallel",)),
    )(*inputs)

    return out[:B].reshape(B, num_seeds, dim)


# ----------------------------- plain-JAX reference --------------------------

def _layernorm_ref(x, eps=1e-5):
    mu = jnp.mean(x, axis=-1, keepdims=True)
    var = jnp.mean((x - mu) ** 2, axis=-1, keepdims=True)
    return (x - mu) / jnp.sqrt(var + eps)


def pma_reference(X, S, params, num_heads, ln=False):
    B, n_set, dim = X.shape
    num_seeds = S.shape[0]
    Q = jnp.broadcast_to(S[None], (B, num_seeds, dim))
    q = Q @ params["wq"] + params["bq"]
    k = X @ params["wk"] + params["bk"]
    v = X @ params["wv"] + params["bv"]
    q_ = jnp.concatenate(jnp.split(q, num_heads, axis=2), axis=0)
    k_ = jnp.concatenate(jnp.split(k, num_heads, axis=2), axis=0)
    v_ = jnp.concatenate(jnp.split(v, num_heads, axis=2), axis=0)
    a = jax.nn.softmax(
        jnp.einsum("bqd,bkd->bqk", q_, k_) / math.sqrt(dim), axis=2)
    o = q_ + jnp.einsum("bqk,bkd->bqd", a, v_)
    o = jnp.concatenate(jnp.split(o, num_heads, axis=0), axis=2)
    if ln:
        o = _layernorm_ref(o)
    o = o + jax.nn.sigmoid(o @ params["wo"] + params["bo"])
    if ln:
        o = _layernorm_ref(o)
    return o


if __name__ == "__main__":
    # Small shapes consistent with PAB's dec PMA: dim_hidden=32, num_heads=4,
    # p_outputs(num_seeds)=4, set_size(n_set)=8, batch=16.
    B, n_set, dim = 16, 8, 32
    num_heads, num_seeds = 4, 4

    key = jax.random.PRNGKey(0)
    ks = jax.random.split(key, 10)

    def xavier(k, shape):
        bound = math.sqrt(6.0 / (shape[0] + shape[1]))
        return jax.random.uniform(k, shape, jnp.float32, -bound, bound)

    X = jax.random.normal(ks[0], (B, n_set, dim), jnp.float32)
    S = xavier(ks[1], (num_seeds, dim))   # nn.Parameter(1, num_seeds, dim), squeezed

    params = {
        "wq": xavier(ks[2], (dim, dim)), "bq": jax.random.normal(ks[3], (1, dim)) * 0.01,
        "wk": xavier(ks[4], (dim, dim)), "bk": jax.random.normal(ks[5], (1, dim)) * 0.01,
        "wv": xavier(ks[6], (dim, dim)), "bv": jax.random.normal(ks[7], (1, dim)) * 0.01,
        "wo": xavier(ks[8], (dim, dim)), "bo": jax.random.normal(ks[9], (1, dim)) * 0.01,
    }

    # PAB instantiates PMA with ln=True; verify both the ln=False (PMA default)
    # and the ln=True variants against the plain-JAX reference.
    for ln_flag in (False, True):
        out = jax.block_until_ready(
            pma_forward(X, S, params, num_heads, ln=ln_flag))
        ref = pma_reference(X, S, params, num_heads, ln=ln_flag)
        assert out.shape == (B, num_seeds, dim), out.shape
        err = float(jnp.max(jnp.abs(out - ref)))
        # approx=True reciprocal (+1 Newton step) inside the kernel -> keep the
        # same small tolerance the reviewed version used.
        assert jnp.allclose(out, ref, atol=1e-3, rtol=1e-3), err

    print("KERNEL_OK")
</pallas_src>

<mosaic_0001>
module attributes {stable_mosaic.version = 11 : i64} {
  func.func @kernel(%arg0: i32, %arg1: memref<16x8x32xf32, #tpu.memory_space<vmem>>, %arg2: memref<1x128xf32, #tpu.memory_space<vmem>>, %arg3: memref<32x16xf32, #tpu.memory_space<vmem>>, %arg4: memref<1x16xf32, #tpu.memory_space<vmem>>, %arg5: memref<32x128xf32, #tpu.memory_space<vmem>>, %arg6: memref<1x128xf32, #tpu.memory_space<vmem>>, %arg7: memref<16x128xf32, #tpu.memory_space<vmem>>, %arg8: memref<128x128xf32, #tpu.memory_space<vmem>>, %arg9: memref<1x128xf32, #tpu.memory_space<vmem>>, %arg10: memref<16x128xf32, #tpu.memory_space<vmem>>) attributes {dimension_semantics = [#tpu.dimension_semantics<parallel>], iteration_bounds = array<i64: 1>, scalar_prefetch = 0 : i64, scratch_operands = 0 : i64, tpu.core_type = #tpu.core_type<tc>, window_params = [{transform_indices = @transform_0, window_bounds = array<i64: 16, 8, 32>}, {pipeline_mode = #tpu.pipeline_mode<synchronous>, transform_indices = @transform_1, window_bounds = array<i64: 1, 128>}, {pipeline_mode = #tpu.pipeline_mode<synchronous>, transform_indices = @transform_2, window_bounds = array<i64: 32, 16>}, {pipeline_mode = #tpu.pipeline_mode<synchronous>, transform_indices = @transform_3, window_bounds = array<i64: 1, 16>}, {pipeline_mode = #tpu.pipeline_mode<synchronous>, transform_indices = @transform_4, window_bounds = array<i64: 32, 128>}, {pipeline_mode = #tpu.pipeline_mode<synchronous>, transform_indices = @transform_5, window_bounds = array<i64: 1, 128>}, {pipeline_mode = #tpu.pipeline_mode<synchronous>, transform_indices = @transform_6, window_bounds = array<i64: 16, 128>}, {pipeline_mode = #tpu.pipeline_mode<synchronous>, transform_indices = @transform_7, window_bounds = array<i64: 128, 128>}, {pipeline_mode = #tpu.pipeline_mode<synchronous>, transform_indices = @transform_8, window_bounds = array<i64: 1, 128>}, {transform_indices = @transform_9, window_bounds = array<i64: 16, 128>}]} {
    %c0 = arith.constant 0 : index
    %c0_0 = arith.constant 0 : index
    %c0_1 = arith.constant 0 : index
    %0 = vector.load %arg1[%c0, %c0_0, %c0_1] : memref<16x8x32xf32, #tpu.memory_space<vmem>>, vector<16x8x32xf32>
    %1 = vector.shape_cast %0 : vector<16x8x32xf32> to vector<128x32xf32>
    %c0_2 = arith.constant 0 : index
    %c0_3 = arith.constant 0 : index
    %2 = vector.load %arg3[%c0_2, %c0_3] : memref<32x16xf32, #tpu.memory_space<vmem>>, vector<32x16xf32>
    %cst = arith.constant dense<0.000000e+00> : vector<128x16xf32>
    %3 = tpu.matmul %1, %2, %cst {dimension_numbers = #tpu.dot_dimension_numbers<[1], [0], [0], [1], [0, 0, 1, 1], [], []>} : vector<128x32xf32>, vector<32x16xf32>, vector<128x16xf32> -> vector<128x16xf32>
    %c0_4 = arith.constant 0 : index
    %c0_5 = arith.constant 0 : index
    %4 = vector.load %arg4[%c0_4, %c0_5] : memref<1x16xf32, #tpu.memory_space<vmem>>, vector<1x16xf32>
    %5 = vector.broadcast %4 : vector<1x16xf32> to vector<128x16xf32>
    %6 = arith.addf %3, %5 : vector<128x16xf32>
    %7 = vector.shape_cast %6 : vector<128x16xf32> to vector<16x8x16xf32>
    %cst_6 = arith.constant dense<0xFF800000> : vector<16x16xf32>
    %8 = vector.multi_reduction <maximumf>, %7, %cst_6 [1] : vector<16x8x16xf32> to vector<16x16xf32>
    %9 = vector.shape_cast %8 : vector<16x16xf32> to vector<16x1x16xf32>
    %10 = vector.broadcast %9 : vector<16x1x16xf32> to vector<16x8x16xf32>
    %11 = arith.subf %7, %10 : vector<16x8x16xf32>
    %12 = math.exp %11 : vector<16x8x16xf32>
    %cst_7 = arith.constant dense<0.000000e+00> : vector<16x16xf32>
    %13 = vector.multi_reduction <add>, %12, %cst_7 [1] : vector<16x8x16xf32> to vector<16x16xf32>
    %14 = vector.shape_cast %13 : vector<16x16xf32> to vector<16x1x16xf32>
    %15 = tpu.reciprocal %14 {approx = true} : vector<16x1x16xf32> -> vector<16x1x16xf32>
    %16 = arith.mulf %14, %15 : vector<16x1x16xf32>
    %cst_8 = arith.constant 2.000000e+00 : f32
    %17 = vector.broadcast %cst_8 : f32 to vector<16x1x16xf32>
    %18 = arith.subf %17, %16 : vector<16x1x16xf32>
    %19 = arith.mulf %15, %18 : vector<16x1x16xf32>
    %20 = vector.broadcast %19 : vector<16x1x16xf32> to vector<16x8x16xf32>
    %21 = arith.mulf %12, %20 : vector<16x8x16xf32>
    %22 = vector.shape_cast %21 : vector<16x8x16xf32> to vector<128x16xf32>
    %c0_9 = arith.constant 0 : index
    %c0_10 = arith.constant 0 : index
    %23 = vector.load %arg7[%c0_9, %c0_10] : memref<16x128xf32, #tpu.memory_space<vmem>>, vector<16x128xf32>
    %cst_11 = arith.constant dense<0.000000e+00> : vector<128x128xf32>
    %24 = tpu.matmul %22, %23, %cst_11 {dimension_numbers = #tpu.dot_dimension_numbers<[1], [0], [0], [1], [0, 0, 1, 1], [], []>} : vector<128x16xf32>, vector<16x128xf32>, vector<128x128xf32> -> vector<128x128xf32>
    %c0_12 = arith.constant 0 : index
    %c0_13 = arith.constant 0 : index
    %25 = vector.load %arg5[%c0_12, %c0_13] : memref<32x128xf32, #tpu.memory_space<vmem>>, vector<32x128xf32>
    %cst_14 = arith.constant dense<0.000000e+00> : vector<128x128xf32>
    %26 = tpu.matmul %1, %25, %cst_14 {dimension_numbers = #tpu.dot_dimension_numbers<[1], [0], [0], [1], [0, 0, 1, 1], [], []>} : vector<128x32xf32>, vector<32x128xf32>, vector<128x128xf32> -> vector<128x128xf32>
    %c0_15 = arith.constant 0 : index
    %c0_16 = arith.constant 0 : index
    %27 = vector.load %arg6[%c0_15, %c0_16] : memref<1x128xf32, #tpu.memory_space<vmem>>, vector<1x128xf32>
    %28 = vector.broadcast %27 : vector<1x128xf32> to vector<128x128xf32>
    %29 = arith.addf %26, %28 : vector<128x128xf32>
    %30 = arith.mulf %24, %29 : vector<128x128xf32>
    %31 = vector.shape_cast %30 : vector<128x128xf32> to vector<16x8x128xf32>
    %cst_17 = arith.constant dense<0.000000e+00> : vector<16x128xf32>
    %32 = vector.multi_reduction <add>, %31, %cst_17 [1] : vector<16x8x128xf32> to vector<16x128xf32>
    %c0_18 = arith.constant 0 : index
    %c0_19 = arith.constant 0 : index
    %33 = vector.load %arg2[%c0_18, %c0_19] : memref<1x128xf32, #tpu.memory_space<vmem>>, vector<1x128xf32>
    %34 = vector.broadcast %33 : vector<1x128xf32> to vector<16x128xf32>
    %35 = arith.addf %34, %32 : vector<16x128xf32>
    %c0_20 = arith.constant 0 : index
    %c0_21 = arith.constant 0 : index
    %36 = vector.load %arg8[%c0_20, %c0_21] : memref<128x128xf32, #tpu.memory_space<vmem>>, vector<128x128xf32>
    %cst_22 = arith.constant dense<0.000000e+00> : vector<16x128xf32>
    %37 = tpu.matmul %35, %36, %cst_22 {dimension_numbers = #tpu.dot_dimension_numbers<[1], [0], [0], [1], [0, 0, 1, 1], [], []>} : vector<16x128xf32>, vector<128x128xf32>, vector<16x128xf32> -> vector<16x128xf32>
    %c0_23 = arith.constant 0 : index
    %c0_24 = arith.constant 0 : index
    %38 = vector.load %arg9[%c0_23, %c0_24] : memref<1x128xf32, #tpu.memory_space<vmem>>, vector<1x128xf32>
    %39 = vector.broadcast %38 : vector<1x128xf32> to vector<16x128xf32>
    %40 = arith.addf %37, %39 : vector<16x128xf32>
    %cst_25 = arith.constant 0.000000e+00 : f32
    %41 = vector.broadcast %cst_25 : f32 to vector<16x128xf32>
    %42 = arith.subf %41, %40 : vector<16x128xf32>
    %43 = math.exp %42 : vector<16x128xf32>
    %cst_26 = arith.constant 1.000000e+00 : f32
    %44 = vector.broadcast %cst_26 : f32 to vector<16x128xf32>
    %45 = arith.addf %44, %43 : vector<16x128xf32>
    %46 = tpu.reciprocal %45 {approx = true} : vector<16x128xf32> -> vector<16x128xf32>
    %47 = arith.mulf %45, %46 : vector<16x128xf32>
    %cst_27 = arith.constant 2.000000e+00 : f32
    %48 = vector.broadcast %cst_27 : f32 to vector<16x128xf32>
    %49 = arith.subf %48, %47 : vector<16x128xf32>
    %50 = arith.mulf %46, %49 : vector<16x128xf32>
    %51 = arith.addf %35, %50 : vector<16x128xf32>
    %c0_28 = arith.constant 0 : index
    %c0_29 = arith.constant 0 : index
    %52 = vector.load %arg10[%c0_28, %c0_29] : memref<16x128xf32, #tpu.memory_space<vmem>>, vector<16x128xf32>
    tpu.vector_store %arg10[%c0_28, %c0_29], %51 {strides = array<i32>} : memref<16x128xf32, #tpu.memory_space<vmem>>, vector<16x128xf32>,
    return
  }
  func.func @transform_0(%arg0: i32) -> (i32, i32, i32) {
    %c0_i32 = arith.constant 0 : i32
    %c0_i32_0 = arith.constant 0 : i32
    %c0_i32_1 = arith.constant 0 : i32
    return %arg0, %c0_i32, %c0_i32_0 : i32, i32, i32
  }
  func.func @transform_1(%arg0: i32) -> (i32, i32) {
    %c0_i32 = arith.constant 0 : i32
    %c0_i32_0 = arith.constant 0 : i32
    %c0_i32_1 = arith.constant 0 : i32
    return %c0_i32, %c0_i32_0 : i32, i32
  }
  func.func @transform_2(%arg0: i32) -> (i32, i32) {
    %c0_i32 = arith.constant 0 : i32
    %c0_i32_0 = arith.constant 0 : i32
    %c0_i32_1 = arith.constant 0 : i32
    return %c0_i32, %c0_i32_0 : i32, i32
  }
  func.func @transform_3(%arg0: i32) -> (i32, i32) {
    %c0_i32 = arith.constant 0 : i32
    %c0_i32_0 = arith.constant 0 : i32
    %c0_i32_1 = arith.constant 0 : i32
    return %c0_i32, %c0_i32_0 : i32, i32
  }
  func.func @transform_4(%arg0: i32) -> (i32, i32) {
    %c0_i32 = arith.constant 0 : i32
    %c0_i32_0 = arith.constant 0 : i32
    %c0_i32_1 = arith.constant 0 : i32
    return %c0_i32, %c0_i32_0 : i32, i32
  }
  func.func @transform_5(%arg0: i32) -> (i32, i32) {
    %c0_i32 = arith.constant 0 : i32
    %c0_i32_0 = arith.constant 0 : i32
    %c0_i32_1 = arith.constant 0 : i32
    return %c0_i32, %c0_i32_0 : i32, i32
  }
  func.func @transform_6(%arg0: i32) -> (i32, i32) {
    %c0_i32 = arith.constant 0 : i32
    %c0_i32_0 = arith.constant 0 : i32
    %c0_i32_1 = arith.constant 0 : i32
    return %c0_i32, %c0_i32_0 : i32, i32
  }
  func.func @transform_7(%arg0: i32) -> (i32, i32) {
    %c0_i32 = arith.constant 0 : i32
    %c0_i32_0 = arith.constant 0 : i32
    %c0_i32_1 = arith.constant 0 : i32
    return %c0_i32, %c0_i32_0 : i32, i32
  }
  func.func @transform_8(%arg0: i32) -> (i32, i32) {
    %c0_i32 = arith.constant 0 : i32
    %c0_i32_0 = arith.constant 0 : i32
    %c0_i32_1 = arith.constant 0 : i32
    return %c0_i32, %c0_i32_0 : i32, i32
  }
  func.func @transform_9(%arg0: i32) -> (i32, i32) {
    %c0_i32 = arith.constant 0 : i32
    %c0_i32_0 = arith.constant 0 : i32
    return %arg0, %c0_i32 : i32, i32
  }
}

</mosaic_0001>

<llo_original>
// kernel: tpu_custom_call.1
$region0: #{tpu_custom_call.1}
  #allocation0 [shape = 'u32[]', space=smem, size = 0x4, offset = 0x4, fixed_abs, tag = 'smem constant byte address 0x4 - core index']
  #allocation1 [shape = 'u32[72,128]{1,0:T(1,128)}', space=vmem, size = 0x9000, scoped, tag = 'internal scratch']
  %s0 = inlined_call_operand.hbm [shape: f32[16,8,32], index: 0, kind: input, shape index: {}]
  %s1 = inlined_call_operand.vmem [shape: f32[1,128], index: 1, kind: input, shape index: {}]
  %s2 = inlined_call_operand.vmem [shape: f32[32,16], index: 2, kind: input, shape index: {}]
  %s3 = inlined_call_operand.vmem [shape: f32[1,16], index: 3, kind: input, shape index: {}]
  %s4 = inlined_call_operand.vmem [shape: f32[32,128], index: 4, kind: input, shape index: {}]
  %s5 = inlined_call_operand.vmem [shape: f32[1,128], index: 5, kind: input, shape index: {}]
  %s6 = inlined_call_operand.vmem [shape: f32[16,128], index: 6, kind: input, shape index: {}]
  %s7 = inlined_call_operand.hbm [shape: f32[128,128], index: 7, kind: input, shape index: {}]
  %s8 = inlined_call_operand.vmem [shape: f32[1,128], index: 8, kind: input, shape index: {}]
  %s9 = inlined_call_operand.hbm [shape: f32[16,128], index: 9, kind: output, shape index: {}]
  %s10 = sld [smem:[#allocation0]]
  $region54: #{tpu_custom_call.1} parent=0
    _
  %s12 = ssub.s32 1, %s10
  %s13 = scalar_select 0, %s12, %s10
  $region1: #{tpu_custom_call.1} parent=0
    #allocation2 [shape = 'u8[65536]{0}', space=vmem, size = 0x10000, scoped, tag = 'input window, operand 0, single buffered']
    #allocation3 [shape = 's32[1]{0}', space=sflag, size = 0x4, scoped, tag = 'scoped memory for tpu_custom_call.1']
    #allocation4 [shape = 's32[1]{0}', space=sflag, size = 0x4, scoped, tag = 'scoped memory for tpu_custom_call.1']
    #allocation5 [shape = 'u8[65536]{0}', space=vmem, size = 0x10000, scoped, tag = 'input window, operand 7, single buffered']
    #allocation6 [shape = 's32[1]{0}', space=sflag, size = 0x4, scoped, tag = 'scoped memory for tpu_custom_call.1']
    #allocation7 [shape = 'u8[8192]{0}', space=vmem, size = 0x2000, scoped, tag = 'output window, operand 0, single buffered']
    %14 = vsyncpa [#allocation3], 0
    %15 = vsyncpa [#allocation6], 0
    %16 = vsyncpa [#allocation4], 0
    // Predicated region
    $region2: #{tpu_custom_call.1} parent=1 // pred_check
      _
    $region3: #{tpu_custom_call.1} parent=1 // pred_check_branch
      %18 = sbr.rel (0) target = $region5
    $region4: #{tpu_custom_call.1} parent=1 // pred_region
      %20 = vsyncadd [#allocation3], 0
      %s21 = sshll.u32 %s0, 4
      %s22 = int_to_ptr.hbm [resolvable:$true] %s21
      %s23 = sshll.u32 [#allocation2], 4
      %s24 = int_to_ptr.vmem [resolvable:$true] %s23
      %29 = dma.hbm_to_vmem [thread:$0]  %s22, 2048, %s24, [#allocation3], 128, 128, 8
    $region5: #{tpu_custom_call.1} parent=1 // pred_fallthru
      _
    // Predicated region
    $region6: #{tpu_custom_call.1} parent=1 // pred_check
      _
    $region7: #{tpu_custom_call.1} parent=1 // pred_check_branch
      %31 = sbr.rel (0) target = $region9
    $region8: #{tpu_custom_call.1} parent=1 // pred_region
      _
    $region9: #{tpu_custom_call.1} parent=1 // pred_fallthru
      _
    // Predicated region
    $region10: #{tpu_custom_call.1} parent=1 // pred_check
      _
    $region11: #{tpu_custom_call.1} parent=1 // pred_check_branch
      %33 = sbr.rel (0) target = $region13
    $region12: #{tpu_custom_call.1} parent=1 // pred_region
      _
    $region13: #{tpu_custom_call.1} parent=1 // pred_fallthru
      _
    // Predicated region
    $region14: #{tpu_custom_call.1} parent=1 // pred_check
      _
    $region15: #{tpu_custom_call.1} parent=1 // pred_check_branch
      %35 = sbr.rel (0) target = $region17
    $region16: #{tpu_custom_call.1} parent=1 // pred_region
      _
    $region17: #{tpu_custom_call.1} parent=1 // pred_fallthru
      _
    // Predicated region
    $region18: #{tpu_custom_call.1} parent=1 // pred_check
      _
    $region19: #{tpu_custom_call.1} parent=1 // pred_check_branch
      %37 = sbr.rel (0) target = $region21
    $region20: #{tpu_custom_call.1} parent=1 // pred_region
      _
    $region21: #{tpu_custom_call.1} parent=1 // pred_fallthru
      _
    // Predicated region
    $region22: #{tpu_custom_call.1} parent=1 // pred_check
      _
    $region23: #{tpu_custom_call.1} parent=1 // pred_check_branch
      %39 = sbr.rel (0) target = $region25
    $region24: #{tpu_custom_call.1} parent=1 // pred_region
      _
    $region25: #{tpu_custom_call.1} parent=1 // pred_fallthru
      _
    // Predicated region
    $region26: #{tpu_custom_call.1} parent=1 // pred_check
      _
    $region27: #{tpu_custom_call.1} parent=1 // pred_check_branch
      %41 = sbr.rel (0) target = $region29
    $region28: #{tpu_custom_call.1} parent=1 // pred_region
      _
    $region29: #{tpu_custom_call.1} parent=1 // pred_fallthru
      _
    // Predicated region
    $region30: #{tpu_custom_call.1} parent=1 // pred_check
      _
    $region31: #{tpu_custom_call.1} parent=1 // pred_check_branch
      %43 = sbr.rel (0) target = $region33
    $region32: #{tpu_custom_call.1} parent=1 // pred_region
      %45 = vsyncadd [#allocation6], 0
      %s46 = sshll.u32 %s7, 4
      %s47 = int_to_ptr.hbm [resolvable:$true] %s46
      %s48 = sshll.u32 [#allocation5], 4
      %s49 = int_to_ptr.vmem [resolvable:$true] %s48
      %54 = dma.hbm_to_vmem [thread:$0]  %s47, 2048, %s49, [#allocation6], 128, 128, 8
    $region33: #{tpu_custom_call.1} parent=1 // pred_fallthru
      _
    // Predicated region
    $region34: #{tpu_custom_call.1} parent=1 // pred_check
      _
    $region35: #{tpu_custom_call.1} parent=1 // pred_check_branch
      %56 = sbr.rel (0) target = $region37
    $region36: #{tpu_custom_call.1} parent=1 // pred_region
      _
    $region37: #{tpu_custom_call.1} parent=1 // pred_fallthru
      _
    // Predicated region
    $region38: #{tpu_custom_call.1} parent=1 // pred_check
      _
    $region39: #{tpu_custom_call.1} parent=1 // pred_check_branch
      %58 = sbr.rel (0) target = $region41
    $region40: #{tpu_custom_call.1} parent=1 // pred_region
      %60 = dma.done [#allocation3], 2048
    $region41: #{tpu_custom_call.1} parent=1 // pred_fallthru
      _
    // Predicated region
    $region42: #{tpu_custom_call.1} parent=1 // pred_check
      _
    $region43: #{tpu_custom_call.1} parent=1 // pred_check_branch
      %62 = sbr.rel (0) target = $region45
    $region44: #{tpu_custom_call.1} parent=1 // pred_region
      %64 = dma.done [#allocation6], 2048
    $region45: #{tpu_custom_call.1} parent=1 // pred_fallthru
      _
    %v65 = vld [vmem:[#allocation2] sm:$0xff]
    %v66 = vld [vmem:[#allocation2 + $0x8] sm:$0xff]
    %v67 = vld [vmem:[#allocation2 + $0x10] sm:$0xff]
    %v68 = vld [vmem:[#allocation2 + $0x18] sm:$0xff]
    %v69 = vld [vmem:[#allocation2 + $0x20] sm:$0xff]
    %v70 = vld [vmem:[#allocation2 + $0x28] sm:$0xff]
    %v71 = vld [vmem:[#allocation2 + $0x30] sm:$0xff]
    %v72 = vld [vmem:[#allocation2 + $0x38] sm:$0xff]
    %v73 = vld [vmem:[#allocation2 + $0x40] sm:$0xff]
    %v74 = vld [vmem:[#allocation2 + $0x48] sm:$0xff]
    %v75 = vld [vmem:[#allocation2 + $0x50] sm:$0xff]
    %v76 = vld [vmem:[#allocation2 + $0x58] sm:$0xff]
    %v77 = vld [vmem:[#allocation2 + $0x60] sm:$0xff]
    %v78 = vld [vmem:[#allocation2 + $0x68] sm:$0xff]
    %v79 = vld [vmem:[#allocation2 + $0x70] sm:$0xff]
    %v80 = vld [vmem:[#allocation2 + $0x78] sm:$0xff]
    %v81 = vld [vmem:[%s2] sm:$0xff]
    %v82 = vld [vmem:[%s2 + $0x8] sm:$0xff]
    %v83 = vld [vmem:[%s2 + $0x10] sm:$0xff]
    %v84 = vld [vmem:[%s2 + $0x18] sm:$0xff]
    %v85 = vld [vmem:[%s3] sm:$0x1]
    %v87 = vperm.slane %v85, 0
    %vm89 = vcmask 261120
    %v91 = vsel %vm89, %v65, 0
    %v94 = vsel %vm89, %v66, 0
    %v97 = vsel %vm89, %v67, 0
    %v100 = vsel %vm89, %v68, 0
    %v103 = vsel %vm89, %v69, 0
    %v106 = vsel %vm89, %v70, 0
    %v109 = vsel %vm89, %v71, 0
    %v112 = vsel %vm89, %v72, 0
    %v115 = vsel %vm89, %v73, 0
    %v118 = vsel %vm89, %v74, 0
    %v121 = vsel %vm89, %v75, 0
    %v124 = vsel %vm89, %v76, 0
    %v127 = vsel %vm89, %v77, 0
    %v130 = vsel %vm89, %v78, 0
    %v133 = vsel %vm89, %v79, 0
    %v136 = vsel %vm89, %v80, 0
    %138 = vmatpush.msra.mxu0 0.0
    %139 = vmatpush.msra.mxu0 0.0
    %140 = vmatpush.msra.mxu0 0.0
    %141 = vmatpush.msra.mxu0 0.0
    %142 = vmatpush.msra.mxu0 0.0
    %143 = vmatpush.msra.mxu0 0.0
    %144 = vmatpush.msra.mxu0 0.0
    %145 = vmatpush.msra.mxu0 0.0
    %146 = vmatpush.msra.mxu0 0.0
    %147 = vmatpush.msra.mxu0 0.0
    %148 = vmatpush.msra.mxu0 0.0
    %149 = vmatpush.msra.mxu0 0.0
    %150 = vmatpush.msra.mxu0 %v84
    %151 = vmatpush.msra.mxu0 %v83
    %152 = vmatpush.msra.mxu0 %v82
    %153 = vmatpush.msra.mxu0 %v81
    %154 = vmatmul.f32.gmra.mxu0 %v91
    %v155 = vpop.f32.mrf.mxu0
    %v156 = vadd.f32 %v87, %v155
    %157 = vmatmul.f32.gmra.mxu0 %v94
    %v158 = vpop.f32.mrf.mxu0
    %v159 = vadd.f32 %v87, %v158
    %160 = vmatmul.f32.gmra.mxu0 %v97
    %v161 = vpop.f32.mrf.mxu0
    %v162 = vadd.f32 %v87, %v161
    %163 = vmatmul.f32.gmra.mxu0 %v100
    %v164 = vpop.f32.mrf.mxu0
    %v165 = vadd.f32 %v87, %v164
    %166 = vmatmul.f32.gmra.mxu0 %v103
    %v167 = vpop.f32.mrf.mxu0
    %v168 = vadd.f32 %v87, %v167
    %169 = vmatmul.f32.gmra.mxu0 %v106
    %v170 = vpop.f32.mrf.mxu0
    %v171 = vadd.f32 %v87, %v170
    %172 = vmatmul.f32.gmra.mxu0 %v109
    %v173 = vpop.f32.mrf.mxu0
    %v174 = vadd.f32 %v87, %v173
    %175 = vmatmul.f32.gmra.mxu0 %v112
    %v176 = vpop.f32.mrf.mxu0
    %v177 = vadd.f32 %v87, %v176
    %178 = vmatmul.f32.gmra.mxu0 %v115
    %v179 = vpop.f32.mrf.mxu0
    %v180 = vadd.f32 %v87, %v179
    %181 = vmatmul.f32.gmra.mxu0 %v118
    %v182 = vpop.f32.mrf.mxu0
    %v183 = vadd.f32 %v87, %v182
    %184 = vmatmul.f32.gmra.mxu0 %v121
    %v185 = vpop.f32.mrf.mxu0
    %v186 = vadd.f32 %v87, %v185
    %187 = vmatmul.f32.gmra.mxu0 %v124
    %v188 = vpop.f32.mrf.mxu0
    %v189 = vadd.f32 %v87, %v188
    %190 = vmatmul.f32.gmra.mxu0 %v127
    %v191 = vpop.f32.mrf.mxu0
    %v192 = vadd.f32 %v87, %v191
    %193 = vmatmul.f32.gmra.mxu0 %v130
    %v194 = vpop.f32.mrf.mxu0
    %v195 = vadd.f32 %v87, %v194
    %196 = vmatmul.f32.gmra.mxu0 %v133
    %v197 = vpop.f32.mrf.mxu0
    %v198 = vadd.f32 %v87, %v197
    %199 = vmatmul.f32.gmra.mxu0 %v136
    %v200 = vpop.f32.mrf.mxu0
    %v201 = vadd.f32 %v87, %v200
    %202 = vdwg.mxu0
    %vm203 = vcmask 130048
    %v204 = vsel %vm203, %v156, -inf
    %v205 = vrot.slane %v204, 4
    %v206 = vmax.f32 %v204, %v205
    %v207 = vrot.slane %v206, 2
    %v208 = vmax.f32 %v206, %v207
    %v209 = vrot.slane %v208, 1
    %v210 = vmax.f32 %v208, %v209
    %v211 = vsel %vm203, %v159, -inf
    %v212 = vrot.slane %v211, 4
    %v213 = vmax.f32 %v211, %v212
    %v214 = vrot.slane %v213, 2
    %v215 = vmax.f32 %v213, %v214
    %v216 = vrot.slane %v215, 1
    %v217 = vmax.f32 %v215, %v216
    %v218 = vsel %vm203, %v162, -inf
    %v219 = vrot.slane %v218, 4
    %v220 = vmax.f32 %v218, %v219
    %v221 = vrot.slane %v220, 2
    %v222 = vmax.f32 %v220, %v221
    %v223 = vrot.slane %v222, 1
    %v224 = vmax.f32 %v222, %v223
    %v225 = vsel %vm203, %v165, -inf
    %v226 = vrot.slane %v225, 4
    %v227 = vmax.f32 %v225, %v226
    %v228 = vrot.slane %v227, 2
    %v229 = vmax.f32 %v227, %v228
    %v230 = vrot.slane %v229, 1
    %v231 = vmax.f32 %v229, %v230
    %v232 = vsel %vm203, %v168, -inf
    %v233 = vrot.slane %v232, 4
    %v234 = vmax.f32 %v232, %v233
    %v235 = vrot.slane %v234, 2
    %v236 = vmax.f32 %v234, %v235
    %v237 = vrot.slane %v236, 1
    %v238 = vmax.f32 %v236, %v237
    %v239 = vsel %vm203, %v171, -inf
    %v240 = vrot.slane %v239, 4
    %v241 = vmax.f32 %v239, %v240
    %v242 = vrot.slane %v241, 2
    %v243 = vmax.f32 %v241, %v242
    %v244 = vrot.slane %v243, 1
    %v245 = vmax.f32 %v243, %v244
    %v246 = vsel %vm203, %v174, -inf
    %v247 = vrot.slane %v246, 4
    %v248 = vmax.f32 %v246, %v247
    %v249 = vrot.slane %v248, 2
    %v250 = vmax.f32 %v248, %v249
    %v251 = vrot.slane %v250, 1
    %v252 = vmax.f32 %v250, %v251
    %v253 = vsel %vm203, %v177, -inf
    %v254 = vrot.slane %v253, 4
    %v255 = vmax.f32 %v253, %v254
    %v256 = vrot.slane %v255, 2
    %v257 = vmax.f32 %v255, %v256
    %v258 = vrot.slane %v257, 1
    %v259 = vmax.f32 %v257, %v258
    %v260 = vsel %vm203, %v180, -inf
    %v261 = vrot.slane %v260, 4
    %v262 = vmax.f32 %v260, %v261
    %v263 = vrot.slane %v262, 2
    %v264 = vmax.f32 %v262, %v263
    %v265 = vrot.slane %v264, 1
    %v266 = vmax.f32 %v264, %v265
    %v267 = vsel %vm203, %v183, -inf
    %v268 = vrot.slane %v267, 4
    %v269 = vmax.f32 %v267, %v268
    %v270 = vrot.slane %v269, 2
    %v271 = vmax.f32 %v269, %v270
    %v272 = vrot.slane %v271, 1
    %v273 = vmax.f32 %v271, %v272
    %v274 = vsel %vm203, %v186, -inf
    %v275 = vrot.slane %v274, 4
    %v276 = vmax.f32 %v274, %v275
    %v277 = vrot.slane %v276, 2
    %v278 = vmax.f32 %v276, %v277
    %v279 = vrot.slane %v278, 1
    %v280 = vmax.f32 %v278, %v279
    %v281 = vsel %vm203, %v189, -inf
    %v282 = vrot.slane %v281, 4
    %v283 = vmax.f32 %v281, %v282
    %v284 = vrot.slane %v283, 2
    %v285 = vmax.f32 %v283, %v284
    %v286 = vrot.slane %v285, 1
    %v287 = vmax.f32 %v285, %v286
    %v288 = vsel %vm203, %v192, -inf
    %v289 = vrot.slane %v288, 4
    %v290 = vmax.f32 %v288, %v289
    %v291 = vrot.slane %v290, 2
    %v292 = vmax.f32 %v290, %v291
    %v293 = vrot.slane %v292, 1
    %v294 = vmax.f32 %v292, %v293
    %v295 = vsel %vm203, %v195, -inf
    %v296 = vrot.slane %v295, 4
    %v297 = vmax.f32 %v295, %v296
    %v298 = vrot.slane %v297, 2
    %v299 = vmax.f32 %v297, %v298
    %v300 = vrot.slane %v299, 1
    %v301 = vmax.f32 %v299, %v300
    %v302 = vsel %vm203, %v198, -inf
    %v303 = vrot.slane %v302, 4
    %v304 = vmax.f32 %v302, %v303
    %v305 = vrot.slane %v304, 2
    %v306 = vmax.f32 %v304, %v305
    %v307 = vrot.slane %v306, 1
    %v308 = vmax.f32 %v306, %v307
    %v309 = vsel %vm203, %v201, -inf
    %v310 = vrot.slane %v309, 4
    %v311 = vmax.f32 %v309, %v310
    %v312 = vrot.slane %v311, 2
    %v313 = vmax.f32 %v311, %v312
    %v314 = vrot.slane %v313, 1
    %v315 = vmax.f32 %v313, %v314
    %v316 = vsub.f32 %v156, %v210
    %v317 = vsub.f32 %v159, %v217
    %v318 = vsub.f32 %v162, %v224
    %v319 = vsub.f32 %v165, %v231
    %v320 = vsub.f32 %v168, %v238
    %v321 = vsub.f32 %v171, %v245
    %v322 = vsub.f32 %v174, %v252
    %v323 = vsub.f32 %v177, %v259
    %v324 = vsub.f32 %v180, %v266
    %v325 = vsub.f32 %v183, %v273
    %v326 = vsub.f32 %v186, %v280
    %v327 = vsub.f32 %v189, %v287
    %v328 = vsub.f32 %v192, %v294
    %v329 = vsub.f32 %v195, %v301
    %v330 = vsub.f32 %v198, %v308
    %v331 = vsub.f32 %v201, %v315
    %v332 = vmul.f32 %v316, 1.442695
    %v333 = vpow.pop %v332
    %v334 = vmul.f32 %v317, 1.442695
    %v335 = vpow.pop %v334
    %v336 = vmul.f32 %v318, 1.442695
    %v337 = vpow.pop %v336
    %v338 = vmul.f32 %v319, 1.442695
    %v339 = vpow.pop %v338
    %v340 = vmul.f32 %v320, 1.442695
    %v341 = vpow.pop %v340
    %v342 = vmul.f32 %v321, 1.442695
    %v343 = vpow.pop %v342
    %v344 = vmul.f32 %v322, 1.442695
    %v345 = vpow.pop %v344
    %v346 = vmul.f32 %v323, 1.442695
    %v347 = vpow.pop %v346
    %v348 = vmul.f32 %v324, 1.442695
    %v349 = vpow.pop %v348
    %v350 = vmul.f32 %v325, 1.442695
    %v351 = vpow.pop %v350
    %v352 = vmul.f32 %v326, 1.442695
    %v353 = vpow.pop %v352
    %v354 = vmul.f32 %v327, 1.442695
    %v355 = vpow.pop %v354
    %v356 = vmul.f32 %v328, 1.442695
    %v357 = vpow.pop %v356
    %v358 = vmul.f32 %v329, 1.442695
    %v359 = vpow.pop %v358
    %v360 = vmul.f32 %v330, 1.442695
    %v361 = vpow.pop %v360
    %v362 = vmul.f32 %v331, 1.442695
    %v363 = vpow.pop %v362
    %v364 = vsel %vm203, %v333, 0.0
    %v365 = vrot.slane %v364, 4
    %v366 = vadd.f32 %v364, %v365
    %v367 = vrot.slane %v366, 2
    %v368 = vadd.f32 %v366, %v367
    %v369 = vrot.slane %v368, 1
    %v370 = vadd.f32 %v368, %v369
    %v371 = vsel %vm203, %v335, 0.0
    %v372 = vrot.slane %v371, 4
    %v373 = vadd.f32 %v371, %v372
    %v374 = vrot.slane %v373, 2
    %v375 = vadd.f32 %v373, %v374
    %v376 = vrot.slane %v375, 1
    %v377 = vadd.f32 %v375, %v376
    %v378 = vsel %vm203, %v337, 0.0
    %v379 = vrot.slane %v378, 4
    %v380 = vadd.f32 %v378, %v379
    %v381 = vrot.slane %v380, 2
    %v382 = vadd.f32 %v380, %v381
    %v383 = vrot.slane %v382, 1
    %v384 = vadd.f32 %v382, %v383
    %v385 = vsel %vm203, %v339, 0.0
    %v386 = vrot.slane %v385, 4
    %v387 = vadd.f32 %v385, %v386
    %v388 = vrot.slane %v387, 2
    %v389 = vadd.f32 %v387, %v388
    %v390 = vrot.slane %v389, 1
    %v391 = vadd.f32 %v389, %v390
    %v392 = vsel %vm203, %v341, 0.0
    %v393 = vrot.slane %v392, 4
    %v394 = vadd.f32 %v392, %v393
    %v395 = vrot.slane %v394, 2
    %v396 = vadd.f32 %v394, %v395
    %v397 = vrot.slane %v396, 1
    %v398 = vadd.f32 %v396, %v397
    %v399 = vsel %vm203, %v343, 0.0
    %v400 = vrot.slane %v399, 4
    %v401 = vadd.f32 %v399, %v400
    %v402 = vrot.slane %v401, 2
    %v403 = vadd.f32 %v401, %v402
    %v404 = vrot.slane %v403, 1
    %v405 = vadd.f32 %v403, %v404
    %v406 = vsel %vm203, %v345, 0.0
    %v407 = vrot.slane %v406, 4
    %v408 = vadd.f32 %v406, %v407
    %v409 = vrot.slane %v408, 2
    %v410 = vadd.f32 %v408, %v409
    %v411 = vrot.slane %v410, 1
    %v412 = vadd.f32 %v410, %v411
    %v413 = vsel %vm203, %v347, 0.0
    %v414 = vrot.slane %v413, 4
    %v415 = vadd.f32 %v413, %v414
    %v416 = vrot.slane %v415, 2
    %v417 = vadd.f32 %v415, %v416
    %v418 = vrot.slane %v417, 1
    %v419 = vadd.f32 %v417, %v418
    %v420 = vsel %vm203, %v349, 0.0
    %v421 = vrot.slane %v420, 4
    %v422 = vadd.f32 %v420, %v421
    %v423 = vrot.slane %v422, 2
    %v424 = vadd.f32 %v422, %v423
    %v425 = vrot.slane %v424, 1
    %v426 = vadd.f32 %v424, %v425
    %v427 = vsel %vm203, %v351, 0.0
    %v428 = vrot.slane %v427, 4
    %v429 = vadd.f32 %v427, %v428
    %v430 = vrot.slane %v429, 2
    %v431 = vadd.f32 %v429, %v430
    %v432 = vrot.slane %v431, 1
    %v433 = vadd.f32 %v431, %v432
    %v434 = vsel %vm203, %v353, 0.0
    %v435 = vrot.slane %v434, 4
    %v436 = vadd.f32 %v434, %v435
    %v437 = vrot.slane %v436, 2
    %v438 = vadd.f32 %v436, %v437
    %v439 = vrot.slane %v438, 1
    %v440 = vadd.f32 %v438, %v439
    %v441 = vsel %vm203, %v355, 0.0
    %v442 = vrot.slane %v441, 4
    %v443 = vadd.f32 %v441, %v442
    %v444 = vrot.slane %v443, 2
    %v445 = vadd.f32 %v443, %v444
    %v446 = vrot.slane %v445, 1
    %v447 = vadd.f32 %v445, %v446
    %v448 = vsel %vm203, %v357, 0.0
    %v449 = vrot.slane %v448, 4
    %v450 = vadd.f32 %v448, %v449
    %v451 = vrot.slane %v450, 2
    %v452 = vadd.f32 %v450, %v451
    %v453 = vrot.slane %v452, 1
    %v454 = vadd.f32 %v452, %v453
    %v455 = vsel %vm203, %v359, 0.0
    %v456 = vrot.slane %v455, 4
    %v457 = vadd.f32 %v455, %v456
    %v458 = vrot.slane %v457, 2
    %v459 = vadd.f32 %v457, %v458
    %v460 = vrot.slane %v459, 1
    %v461 = vadd.f32 %v459, %v460
    %v462 = vsel %vm203, %v361, 0.0
    %v463 = vrot.slane %v462, 4
    %v464 = vadd.f32 %v462, %v463
    %v465 = vrot.slane %v464, 2
    %v466 = vadd.f32 %v464, %v465
    %v467 = vrot.slane %v466, 1
    %v468 = vadd.f32 %v466, %v467
    %v469 = vsel %vm203, %v363, 0.0
    %v470 = vrot.slane %v469, 4
    %v471 = vadd.f32 %v469, %v470
    %v472 = vrot.slane %v471, 2
    %v473 = vadd.f32 %v471, %v472
    %v474 = vrot.slane %v473, 1
    %v475 = vadd.f32 %v473, %v474
    %v476 = vrcp.pop %v370
    %v477 = vrcp.pop %v377
    %v478 = vrcp.pop %v384
    %v479 = vrcp.pop %v391
    %v480 = vrcp.pop %v398
    %v481 = vrcp.pop %v405
    %v482 = vrcp.pop %v412
    %v483 = vrcp.pop %v419
    %v484 = vrcp.pop %v426
    %v485 = vrcp.pop %v433
    %v486 = vrcp.pop %v440
    %v487 = vrcp.pop %v447
    %v488 = vrcp.pop %v454
    %v489 = vrcp.pop %v461
    %v490 = vrcp.pop %v468
    %v491 = vrcp.pop %v475
    %v492 = vmul.f32 %v370, %v476
    %v493 = vmul.f32 %v377, %v477
    %v494 = vmul.f32 %v384, %v478
    %v495 = vmul.f32 %v391, %v479
    %v496 = vmul.f32 %v398, %v480
    %v497 = vmul.f32 %v405, %v481
    %v498 = vmul.f32 %v412, %v482
    %v499 = vmul.f32 %v419, %v483
    %v500 = vmul.f32 %v426, %v484
    %v501 = vmul.f32 %v433, %v485
    %v502 = vmul.f32 %v440, %v486
    %v503 = vmul.f32 %v447, %v487
    %v504 = vmul.f32 %v454, %v488
    %v505 = vmul.f32 %v461, %v489
    %v506 = vmul.f32 %v468, %v490
    %v507 = vmul.f32 %v475, %v491
    %v508 = vsub.f32 2.0, %v492
    %v509 = vsub.f32 2.0, %v493
    %v510 = vsub.f32 2.0, %v494
    %v511 = vsub.f32 2.0, %v495
    %v512 = vsub.f32 2.0, %v496
    %v513 = vsub.f32 2.0, %v497
    %v514 = vsub.f32 2.0, %v498
    %v515 = vsub.f32 2.0, %v499
    %v516 = vsub.f32 2.0, %v500
    %v517 = vsub.f32 2.0, %v501
    %v518 = vsub.f32 2.0, %v502
    %v519 = vsub.f32 2.0, %v503
    %v520 = vsub.f32 2.0, %v504
    %v521 = vsub.f32 2.0, %v505
    %v522 = vsub.f32 2.0, %v506
    %v523 = vsub.f32 2.0, %v507
    %v524 = vmul.f32 %v476, %v508
    %v525 = vmul.f32 %v477, %v509
    %v526 = vmul.f32 %v478, %v510
    %v527 = vmul.f32 %v479, %v511
    %v528 = vmul.f32 %v480, %v512
    %v529 = vmul.f32 %v481, %v513
    %v530 = vmul.f32 %v482, %v514
    %v531 = vmul.f32 %v483, %v515
    %v532 = vmul.f32 %v484, %v516
    %v533 = vmul.f32 %v485, %v517
    %v534 = vmul.f32 %v486, %v518
    %v535 = vmul.f32 %v487, %v519
    %v536 = vmul.f32 %v488, %v520
    %v537 = vmul.f32 %v489, %v521
    %v538 = vmul.f32 %v490, %v522
    %v539 = vmul.f32 %v491, %v523
    %v540 = vmul.f32 %v333, %v524
    %v541 = vmul.f32 %v335, %v525
    %v542 = vmul.f32 %v337, %v526
    %v543 = vmul.f32 %v339, %v527
    %v544 = vmul.f32 %v341, %v528
    %v545 = vmul.f32 %v343, %v529
    %v546 = vmul.f32 %v345, %v530
    %v547 = vmul.f32 %v347, %v531
    %v548 = vmul.f32 %v349, %v532
    %v549 = vmul.f32 %v351, %v533
    %v550 = vmul.f32 %v353, %v534
    %v551 = vmul.f32 %v355, %v535
    %v552 = vmul.f32 %v357, %v536
    %v553 = vmul.f32 %v359, %v537
    %v554 = vmul.f32 %v361, %v538
    %v555 = vmul.f32 %v363, %v539
    %v556 = vld [vmem:[%s6] sm:$0xff]
    %v557 = vld [vmem:[%s6 + $0x8] sm:$0xff]
    %v559 = vsel %vm203, %v540, 0
    %v562 = vsel %vm203, %v541, 0
    %v565 = vsel %vm203, %v542, 0
    %v568 = vsel %vm203, %v543, 0
    %v571 = vsel %vm203, %v544, 0
    %v574 = vsel %vm203, %v545, 0
    %v577 = vsel %vm203, %v546, 0
    %v580 = vsel %vm203, %v547, 0
    %v583 = vsel %vm203, %v548, 0
    %v586 = vsel %vm203, %v549, 0
    %v589 = vsel %vm203, %v550, 0
    %v592 = vsel %vm203, %v551, 0
    %v595 = vsel %vm203, %v552, 0
    %v598 = vsel %vm203, %v553, 0
    %v601 = vsel %vm203, %v554, 0
    %v604 = vsel %vm203, %v555, 0
    %606 = vmatpush.msra.mxu0 0.0
    %607 = vmatpush.msra.mxu0 0.0
    %608 = vmatpush.msra.mxu0 0.0
    %609 = vmatpush.msra.mxu0 0.0
    %610 = vmatpush.msra.mxu0 0.0
    %611 = vmatpush.msra.mxu0 0.0
    %612 = vmatpush.msra.mxu0 0.0
    %613 = vmatpush.msra.mxu0 0.0
    %614 = vmatpush.msra.mxu0 0.0
    %615 = vmatpush.msra.mxu0 0.0
    %616 = vmatpush.msra.mxu0 0.0
    %617 = vmatpush.msra.mxu0 0.0
    %618 = vmatpush.msra.mxu0 0.0
    %619 = vmatpush.msra.mxu0 0.0
    %620 = vmatpush.msra.mxu0 %v557
    %621 = vmatpush.msra.mxu0 %v556
    %622 = vmatmul.f32.gmra.mxu0 %v559
    %v623 = vpop.f32.mrf.mxu0
    %v624 = vadd.f32 0.0, %v623
    %625 = vmatmul.f32.gmra.mxu0 %v562
    %v626 = vpop.f32.mrf.mxu0
    %v627 = vadd.f32 0.0, %v626
    %628 = vmatmul.f32.gmra.mxu0 %v565
    %v629 = vpop.f32.mrf.mxu0
    %v630 = vadd.f32 0.0, %v629
    %631 = vmatmul.f32.gmra.mxu0 %v568
    %v632 = vpop.f32.mrf.mxu0
    %v633 = vadd.f32 0.0, %v632
    %634 = vmatmul.f32.gmra.mxu0 %v571
    %v635 = vpop.f32.mrf.mxu0
    %v636 = vadd.f32 0.0, %v635
    %637 = vmatmul.f32.gmra.mxu0 %v574
    %v638 = vpop.f32.mrf.mxu0
    %v639 = vadd.f32 0.0, %v638
    %640 = vmatmul.f32.gmra.mxu0 %v577
    %v641 = vpop.f32.mrf.mxu0
    %v642 = vadd.f32 0.0, %v641
    %643 = vmatmul.f32.gmra.mxu0 %v580
    %v644 = vpop.f32.mrf.mxu0
    %v645 = vadd.f32 0.0, %v644
    %646 = vmatmul.f32.gmra.mxu0 %v583
    %v647 = vpop.f32.mrf.mxu0
    %v648 = vadd.f32 0.0, %v647
    %649 = vmatmul.f32.gmra.mxu0 %v586
    %v650 = vpop.f32.mrf.mxu0
    %v651 = vadd.f32 0.0, %v650
    %652 = vmatmul.f32.gmra.mxu0 %v589
    %v653 = vpop.f32.mrf.mxu0
    %v654 = vadd.f32 0.0, %v653
    %655 = vmatmul.f32.gmra.mxu0 %v592
    %v656 = vpop.f32.mrf.mxu0
    %v657 = vadd.f32 0.0, %v656
    %658 = vmatmul.f32.gmra.mxu0 %v595
    %v659 = vpop.f32.mrf.mxu0
    %v660 = vadd.f32 0.0, %v659
    %661 = vmatmul.f32.gmra.mxu0 %v598
    %v662 = vpop.f32.mrf.mxu0
    %v663 = vadd.f32 0.0, %v662
    %664 = vmatmul.f32.gmra.mxu0 %v601
    %v665 = vpop.f32.mrf.mxu0
    %v666 = vadd.f32 0.0, %v665
    %667 = vmatmul.f32.gmra.mxu0 %v604
    %v668 = vpop.f32.mrf.mxu0
    %v669 = vadd.f32 0.0, %v668
    %670 = vdwg.mxu0
    %v671 = vld [vmem:[%s4] sm:$0xff]
    %v672 = vld [vmem:[%s4 + $0x8] sm:$0xff]
    %v673 = vld [vmem:[%s4 + $0x10] sm:$0xff]
    %v674 = vld [vmem:[%s4 + $0x18] sm:$0xff]
    %v675 = vld [vmem:[%s5] sm:$0x1]
    %v677 = vperm.slane %v675, 0
    %679 = vmatpush.msra.mxu0 0.0
    %680 = vmatpush.msra.mxu0 0.0
    %681 = vmatpush.msra.mxu0 0.0
    %682 = vmatpush.msra.mxu0 0.0
    %683 = vmatpush.msra.mxu0 0.0
    %684 = vmatpush.msra.mxu0 0.0
    %685 = vmatpush.msra.mxu0 0.0
    %686 = vmatpush.msra.mxu0 0.0
    %687 = vmatpush.msra.mxu0 0.0
    %688 = vmatpush.msra.mxu0 0.0
    %689 = vmatpush.msra.mxu0 0.0
    %690 = vmatpush.msra.mxu0 0.0
    %691 = vmatpush.msra.mxu0 %v674
    %692 = vmatpush.msra.mxu0 %v673
    %693 = vmatpush.msra.mxu0 %v672
    %694 = vmatpush.msra.mxu0 %v671
    %695 = vmatmul.f32.gmra.mxu0 %v91
    %v696 = vpop.f32.mrf.mxu0
    %v697 = vadd.f32 %v677, %v696
    %698 = vmatmul.f32.gmra.mxu0 %v94
    %v699 = vpop.f32.mrf.mxu0
    %v700 = vadd.f32 %v677, %v699
    %701 = vmatmul.f32.gmra.mxu0 %v97
    %v702 = vpop.f32.mrf.mxu0
    %v703 = vadd.f32 %v677, %v702
    %704 = vmatmul.f32.gmra.mxu0 %v100
    %v705 = vpop.f32.mrf.mxu0
    %v706 = vadd.f32 %v677, %v705
    %707 = vmatmul.f32.gmra.mxu0 %v103
    %v708 = vpop.f32.mrf.mxu0
    %v709 = vadd.f32 %v677, %v708
    %710 = vmatmul.f32.gmra.mxu0 %v106
    %v711 = vpop.f32.mrf.mxu0
    %v712 = vadd.f32 %v677, %v711
    %713 = vmatmul.f32.gmra.mxu0 %v109
    %v714 = vpop.f32.mrf.mxu0
    %v715 = vadd.f32 %v677, %v714
    %716 = vmatmul.f32.gmra.mxu0 %v112
    %v717 = vpop.f32.mrf.mxu0
    %v718 = vadd.f32 %v677, %v717
    %719 = vmatmul.f32.gmra.mxu0 %v115
    %v720 = vpop.f32.mrf.mxu0
    %v721 = vadd.f32 %v677, %v720
    %722 = vmatmul.f32.gmra.mxu0 %v118
    %v723 = vpop.f32.mrf.mxu0
    %v724 = vadd.f32 %v677, %v723
    %725 = vmatmul.f32.gmra.mxu0 %v121
    %v726 = vpop.f32.mrf.mxu0
    %v727 = vadd.f32 %v677, %v726
    %728 = vmatmul.f32.gmra.mxu0 %v124
    %v729 = vpop.f32.mrf.mxu0
    %v730 = vadd.f32 %v677, %v729
    %731 = vmatmul.f32.gmra.mxu0 %v127
    %v732 = vpop.f32.mrf.mxu0
    %v733 = vadd.f32 %v677, %v732
    %734 = vmatmul.f32.gmra.mxu0 %v130
    %v735 = vpop.f32.mrf.mxu0
    %v736 = vadd.f32 %v677, %v735
    %737 = vmatmul.f32.gmra.mxu0 %v133
    %v738 = vpop.f32.mrf.mxu0
    %v739 = vadd.f32 %v677, %v738
    %740 = vmatmul.f32.gmra.mxu0 %v136
    %v741 = vpop.f32.mrf.mxu0
    %v742 = vadd.f32 %v677, %v741
    %743 = vdwg.mxu0
    %v744 = vmul.f32 %v624, %v697
    %v745 = vmul.f32 %v627, %v700
    %v746 = vmul.f32 %v630, %v703
    %v747 = vmul.f32 %v633, %v706
    %v748 = vmul.f32 %v636, %v709
    %v749 = vmul.f32 %v639, %v712
    %v750 = vmul.f32 %v642, %v715
    %v751 = vmul.f32 %v645, %v718
    %v752 = vmul.f32 %v648, %v721
    %v753 = vmul.f32 %v651, %v724
    %v754 = vmul.f32 %v654, %v727
    %v755 = vmul.f32 %v657, %v730
    %v756 = vmul.f32 %v660, %v733
    %v757 = vmul.f32 %v663, %v736
    %v758 = vmul.f32 %v666, %v739
    %v759 = vmul.f32 %v669, %v742
    %v760 = vrot.slane %v744, 4
    %v761 = vadd.f32 %v744, %v760
    %v762 = vrot.slane %v761, 2
    %v763 = vadd.f32 %v761, %v762
    %v764 = vrot.slane %v763, 1
    %v765 = vadd.f32 %v763, %v764
    %v766 = vrot.slane %v745, 4
    %v767 = vadd.f32 %v745, %v766
    %v768 = vrot.slane %v767, 2
    %v769 = vadd.f32 %v767, %v768
    %v770 = vrot.slane %v769, 1
    %v771 = vadd.f32 %v769, %v770
    %v772 = vrot.slane %v746, 4
    %v773 = vadd.f32 %v746, %v772
    %v774 = vrot.slane %v773, 2
    %v775 = vadd.f32 %v773, %v774
    %v776 = vrot.slane %v775, 1
    %v777 = vadd.f32 %v775, %v776
    %v778 = vrot.slane %v747, 4
    %v779 = vadd.f32 %v747, %v778
    %v780 = vrot.slane %v779, 2
    %v781 = vadd.f32 %v779, %v780
    %v782 = vrot.slane %v781, 1
    %v783 = vadd.f32 %v781, %v782
    %v784 = vrot.slane %v748, 4
    %v785 = vadd.f32 %v748, %v784
    %v786 = vrot.slane %v785, 2
    %v787 = vadd.f32 %v785, %v786
    %v788 = vrot.slane %v787, 1
    %v789 = vadd.f32 %v787, %v788
    %v790 = vrot.slane %v749, 4
    %v791 = vadd.f32 %v749, %v790
    %v792 = vrot.slane %v791, 2
    %v793 = vadd.f32 %v791, %v792
    %v794 = vrot.slane %v793, 1
    %v795 = vadd.f32 %v793, %v794
    %v796 = vrot.slane %v750, 4
    %v797 = vadd.f32 %v750, %v796
    %v798 = vrot.slane %v797, 2
    %v799 = vadd.f32 %v797, %v798
    %v800 = vrot.slane %v799, 1
    %v801 = vadd.f32 %v799, %v800
    %v802 = vrot.slane %v751, 4
    %v803 = vadd.f32 %v751, %v802
    %v804 = vrot.slane %v803, 2
    %v805 = vadd.f32 %v803, %v804
    %v806 = vrot.slane %v805, 1
    %v807 = vadd.f32 %v805, %v806
    %v808 = vrot.slane %v752, 4
    %v809 = vadd.f32 %v752, %v808
    %v810 = vrot.slane %v809, 2
    %v811 = vadd.f32 %v809, %v810
    %v812 = vrot.slane %v811, 1
    %v813 = vadd.f32 %v811, %v812
    %v814 = vrot.slane %v753, 4
    %v815 = vadd.f32 %v753, %v814
    %v816 = vrot.slane %v815, 2
    %v817 = vadd.f32 %v815, %v816
    %v818 = vrot.slane %v817, 1
    %v819 = vadd.f32 %v817, %v818
    %v820 = vrot.slane %v754, 4
    %v821 = vadd.f32 %v754, %v820
    %v822 = vrot.slane %v821, 2
    %v823 = vadd.f32 %v821, %v822
    %v824 = vrot.slane %v823, 1
    %v825 = vadd.f32 %v823, %v824
    %v826 = vrot.slane %v755, 4
    %v827 = vadd.f32 %v755, %v826
    %v828 = vrot.slane %v827, 2
    %v829 = vadd.f32 %v827, %v828
    %v830 = vrot.slane %v829, 1
    %v831 = vadd.f32 %v829, %v830
    %v832 = vrot.slane %v756, 4
    %v833 = vadd.f32 %v756, %v832
    %v834 = vrot.slane %v833, 2
    %v835 = vadd.f32 %v833, %v834
    %v836 = vrot.slane %v835, 1
    %v837 = vadd.f32 %v835, %v836
    %v838 = vrot.slane %v757, 4
    %v839 = vadd.f32 %v757, %v838
    %v840 = vrot.slane %v839, 2
    %v841 = vadd.f32 %v839, %v840
    %v842 = vrot.slane %v841, 1
    %v843 = vadd.f32 %v841, %v842
    %v844 = vrot.slane %v758, 4
    %v845 = vadd.f32 %v758, %v844
    %v846 = vrot.slane %v845, 2
    %v847 = vadd.f32 %v845, %v846
    %v848 = vrot.slane %v847, 1
    %v849 = vadd.f32 %v847, %v848
    %v850 = vrot.slane %v759, 4
    %v851 = vadd.f32 %v759, %v850
    %v852 = vrot.slane %v851, 2
    %v853 = vadd.f32 %v851, %v852
    %v854 = vrot.slane %v853, 1
    %v855 = vadd.f32 %v853, %v854
    %v856 = vld [vmem:[%s1] sm:$0x1]
    %v858 = vperm.slane %v856, 0
    %vm876 = vcmask 1041409
    %v877 = vsel %vm876, %v771, %v765
    %vm878 = vcmask 1042434
    %v879 = vsel %vm878, %v777, %v877
    %vm880 = vcmask 1043459
    %v881 = vsel %vm880, %v783, %v879
    %vm882 = vcmask 1044484
    %v883 = vsel %vm882, %v789, %v881
    %vm884 = vcmask 1045509
    %v885 = vsel %vm884, %v795, %v883
    %vm886 = vcmask 1046534
    %v887 = vsel %vm886, %v801, %v885
    %vm888 = vcmask 1047559
    %v889 = vsel %vm888, %v807, %v887
    %v890 = vsel %vm876, %v819, %v813
    %v891 = vsel %vm878, %v825, %v890
    %v892 = vsel %vm880, %v831, %v891
    %v893 = vsel %vm882, %v837, %v892
    %v894 = vsel %vm884, %v843, %v893
    %v895 = vsel %vm886, %v849, %v894
    %v896 = vsel %vm888, %v855, %v895
    %v899 = vadd.f32 %v858, %v889
    %v900 = vadd.f32 %v858, %v896
    %v901 = vld [vmem:[#allocation5] sm:$0xff]
    %v902 = vld [vmem:[#allocation5 + $0x8] sm:$0xff]
    %v903 = vld [vmem:[#allocation5 + $0x10] sm:$0xff]
    %v904 = vld [vmem:[#allocation5 + $0x18] sm:$0xff]
    %v905 = vld [vmem:[#allocation5 + $0x20] sm:$0xff]
    %v906 = vld [vmem:[#allocation5 + $0x28] sm:$0xff]
    %v907 = vld [vmem:[#allocation5 + $0x30] sm:$0xff]
    %v908 = vld [vmem:[#allocation5 + $0x38] sm:$0xff]
    %v909 = vld [vmem:[#allocation5 + $0x40] sm:$0xff]
    %v910 = vld [vmem:[#allocation5 + $0x48] sm:$0xff]
    %v911 = vld [vmem:[#allocation5 + $0x50] sm:$0xff]
    %v912 = vld [vmem:[#allocation5 + $0x58] sm:$0xff]
    %v913 = vld [vmem:[#allocation5 + $0x60] sm:$0xff]
    %v914 = vld [vmem:[#allocation5 + $0x68] sm:$0xff]
    %v915 = vld [vmem:[#allocation5 + $0x70] sm:$0xff]
    %v916 = vld [vmem:[#allocation5 + $0x78] sm:$0xff]
    %v917 = vld [vmem:[%s8] sm:$0x1]
    %v919 = vperm.slane %v917, 0
    %921 = vmatpush.msra.mxu0 %v916
    %922 = vmatpush.msra.mxu0 %v915
    %923 = vmatpush.msra.mxu0 %v914
    %924 = vmatpush.msra.mxu0 %v913
    %925 = vmatpush.msra.mxu0 %v912
    %926 = vmatpush.msra.mxu0 %v911
    %927 = vmatpush.msra.mxu0 %v910
    %928 = vmatpush.msra.mxu0 %v909
    %929 = vmatpush.msra.mxu0 %v908
    %930 = vmatpush.msra.mxu0 %v907
    %931 = vmatpush.msra.mxu0 %v906
    %932 = vmatpush.msra.mxu0 %v905
    %933 = vmatpush.msra.mxu0 %v904
    %934 = vmatpush.msra.mxu0 %v903
    %935 = vmatpush.msra.mxu0 %v902
    %936 = vmatpush.msra.mxu0 %v901
    %937 = vmatmul.f32.gmra.mxu0 %v899
    %v938 = vpop.f32.mrf.mxu0
    %v939 = vadd.f32 %v919, %v938
    %940 = vmatmul.f32.gmra.mxu0 %v900
    %v941 = vpop.f32.mrf.mxu0
    %v942 = vadd.f32 %v919, %v941
    %943 = vdwg.mxu0
    %v944 = vsub.f32 0.0, %v939
    %v945 = vsub.f32 0.0, %v942
    %v946 = vmul.f32 %v944, 1.442695
    %v947 = vpow.pop %v946
    %v948 = vmul.f32 %v945, 1.442695
    %v949 = vpow.pop %v948
    %v950 = vadd.f32 %v947, 1.0
    %v951 = vadd.f32 %v949, 1.0
    %v952 = vrcp.pop %v950
    %v953 = vrcp.pop %v951
    %v954 = vmul.f32 %v950, %v952
    %v955 = vmul.f32 %v951, %v953
    %v956 = vsub.f32 2.0, %v954
    %v957 = vsub.f32 2.0, %v955
    %v958 = vmul.f32 %v952, %v956
    %v959 = vmul.f32 %v953, %v957
    %v960 = vadd.f32 %v899, %v958
    %v961 = vadd.f32 %v900, %v959
    %962 = vst [vmem:[#allocation7] sm:$0xff] %v960
    %963 = vst [vmem:[#allocation7 + $0x8] sm:$0xff] %v961
    // Predicated region
    $region46: #{tpu_custom_call.1} parent=1 // pred_check
      _
    $region47: #{tpu_custom_call.1} parent=1 // pred_check_branch
      %965 = sbr.rel (0) target = $region49
    $region48: #{tpu_custom_call.1} parent=1 // pred_region
      %967 = vsyncadd [#allocation4], 0
      %s968 = sshll.u32 [#allocation7], 4
      %s969 = int_to_ptr.vmem [resolvable:$true] %s968
      %s970 = sshll.u32 %s9, 4
      %s971 = int_to_ptr.hbm [resolvable:$true] %s970
      %976 = dma.vmem_to_hbm [thread:$0]  %s969, 256, %s971, [#allocation4], 128, 128, 8
    $region49: #{tpu_custom_call.1} parent=1 // pred_fallthru
      _
    // Predicated region
    $region50: #{tpu_custom_call.1} parent=1 // pred_check
      _
    $region51: #{tpu_custom_call.1} parent=1 // pred_check_branch
      %978 = sbr.rel (0) target = $region53
    $region52: #{tpu_custom_call.1} parent=1 // pred_region
      %980 = dma.done [#allocation4], 256
    $region53: #{tpu_custom_call.1} parent=1 // pred_fallthru
      _
    %981 = vsyncpa [#allocation3], 1
    %982 = vsyncpa [#allocation6], 1
    %983 = vsyncpa [#allocation4], 1

</llo_original>
